<compile_context>
chip_gen: v5e
topology: v5e:2x2
jax: 0.10.0
libtpu: 0.0.40
codegen_flags: <defaults>
</compile_context>

<pallas_src>
import functools

import jax
import jax.numpy as jnp
from jax.experimental import pallas as pl
from jax.experimental.pallas import tpu as pltpu

HIDDEN = 768
DENSE = 128


def _round_up(n, m):
    return ((n + m - 1) // m) * m


def _mos_head_kernel(x_ref, w1_ref, b1_ref, w2t_ref, b2_ref, o_ref, acc_ref,
                     *, t_valid, tm):
    # Grid: (B, num_t_tiles).  One batch element per b-step; T is tiled on axis 1.
    t = pl.program_id(1)
    nt = pl.num_programs(1)

    @pl.when(t == 0)
    def _init():
        acc_ref[...] = jnp.zeros_like(acc_ref)

    x = x_ref[0]                                                   # (TM, 768) bf16
    # Linear(768 -> 128) on the MXU, f32 accumulation; Dropout(0.1) is identity in eval mode.
    h = jnp.dot(x, w1_ref[...], preferred_element_type=jnp.float32)
    h = jnp.maximum(h + b1_ref[...], 0.0)                          # (TM, 128) f32

    # Mask padded rows (only emitted when T is not a multiple of the row tile).
    if t_valid % tm != 0:
        row = t * tm + jax.lax.broadcasted_iota(jnp.int32, (tm, 1), 0)
        h = jnp.where(row < t_valid, h, 0.0)

    # Accumulate sum over the sequence axis (sublane/XLU reduce).
    acc_ref[...] += jnp.sum(h, axis=0, keepdims=True)              # (1, 128)

    @pl.when(t == nt - 1)
    def _finalize():
        # Linear(128 -> 1) folded into the pooled vector: (sum_T h) . w2 / T + b2.
        s = jnp.sum(acc_ref[...] * w2t_ref[...])                   # lane reduce -> scalar
        val = s * (1.0 / t_valid) + b2_ref[0]
        o_ref[...] = jnp.reshape(val, (1, 1, 1)).astype(o_ref.dtype)


def wav2vec2_mos_head(last_hidden_state, w1, b1, w2, b2, *, row_tile=256):
    """last_hidden_state: [B, T, 768] -> [B, 1, 1] f32 (mean MOS logit per batch element)."""
    B, T, D = last_hidden_state.shape
    assert D == HIDDEN

    # Row tile along T: multiple of 8, capped at `row_tile`; pad T up to a whole number of tiles.
    tm = min(row_tile, _round_up(T, 8))
    t_pad = _round_up(T, tm)
    nt = t_pad // tm

    x = last_hidden_state
    if t_pad != T:
        x = jnp.pad(x, ((0, 0), (0, t_pad - T), (0, 0)))

    # bf16 activations/weights, f32 accumulation (halves HBM traffic; native MXU rate).
    x_bf = x.astype(jnp.bfloat16)
    w1_bf = w1.astype(jnp.bfloat16)
    b1_f = b1.reshape(1, DENSE).astype(jnp.float32)
    w2t = w2.reshape(1, DENSE).astype(jnp.float32)     # (128,1) -> (1,128), lane-aligned
    b2_f = b2.reshape(1).astype(jnp.float32)           # SMEM scalar

    kernel = functools.partial(_mos_head_kernel, t_valid=T, tm=tm)

    return pl.pallas_call(
        kernel,
        out_shape=jax.ShapeDtypeStruct((B, 1, 1), jnp.float32),
        grid=(B, nt),
        in_specs=[
            pl.BlockSpec((1, tm, D), lambda b, t: (b, t, 0)),           # x row tile
            pl.BlockSpec((D, DENSE), lambda b, t: (0, 0)),              # W1 (resident, 192 KiB bf16)
            pl.BlockSpec((1, DENSE), lambda b, t: (0, 0)),              # b1
            pl.BlockSpec((1, DENSE), lambda b, t: (0, 0)),              # w2^T
            pl.BlockSpec(memory_space=pltpu.MemorySpace.SMEM),          # b2 scalar
        ],
        out_specs=pl.BlockSpec((1, 1, 1), lambda b, t: (b, 0, 0)),
        scratch_shapes=[pltpu.VMEM((1, DENSE), jnp.float32)],           # per-batch sum_T h
        compiler_params=pltpu.CompilerParams(
            dimension_semantics=("parallel", "arbitrary")),
    )(x_bf, w1_bf, b1_f, w2t, b2_f)


def _reference(x, w1, b1, w2, b2):
    h = jnp.maximum(jnp.einsum("btd,df->btf", x, w1) + b1.reshape(1, 1, -1), 0.0)
    y = jnp.einsum("btf,fo->bto", h, w2) + b2.reshape(1, 1, -1)
    return jnp.mean(y, axis=(1, 2), keepdims=True)


if __name__ == "__main__":
    key = jax.random.PRNGKey(0)
    k_x, k_w1, k_b1, k_w2, k_b2, k_x2 = jax.random.split(key, 6)

    B, T = 2, 16  # small demo shapes; hidden is fixed at 768 by the module

    # "last_hidden_state" stand-in input (encoder output).
    x = jax.random.normal(k_x, (B, T, HIDDEN), dtype=jnp.float32)

    # Deterministic synthetic parameters for the dense head (PyTorch-equivalent layout,
    # stored transposed: W1 = weight1.T, W2 = weight2.T).
    w1 = jax.random.normal(k_w1, (HIDDEN, DENSE), dtype=jnp.float32) * 0.02
    b1 = jax.random.normal(k_b1, (DENSE,), dtype=jnp.float32) * 0.02
    w2 = jax.random.normal(k_w2, (DENSE, 1), dtype=jnp.float32) * 0.02
    b2 = jax.random.normal(k_b2, (1,), dtype=jnp.float32) * 0.02

    out = jax.block_until_ready(wav2vec2_mos_head(x, w1, b1, w2, b2))
    ref = jax.block_until_ready(_reference(x, w1, b1, w2, b2))
    assert out.shape == (B, 1, 1)
    assert jnp.allclose(out, ref, atol=1e-2, rtol=1e-2), (out, ref)

    # Second case: T not a multiple of the row tile -> exercises padding + in-kernel mask.
    T2 = 20
    x2 = jax.random.normal(k_x2, (B, T2, HIDDEN), dtype=jnp.float32)
    out2 = jax.block_until_ready(wav2vec2_mos_head(x2, w1, b1, w2, b2))
    ref2 = jax.block_until_ready(_reference(x2, w1, b1, w2, b2))
    assert out2.shape == (B, 1, 1)
    assert jnp.allclose(out2, ref2, atol=1e-2, rtol=1e-2), (out2, ref2)

    print("KERNEL_OK")
</pallas_src>

<mosaic_0001>
module attributes {stable_mosaic.version = 11 : i64} {
  func.func @_mos_head_kernel(%arg0: i32, %arg1: i32, %arg2: memref<1x16x768xbf16, #tpu.memory_space<vmem>>, %arg3: memref<768x128xbf16, #tpu.memory_space<vmem>>, %arg4: memref<1x128xf32, #tpu.memory_space<vmem>>, %arg5: memref<1x128xf32, #tpu.memory_space<vmem>>, %arg6: memref<1xf32, #tpu.memory_space<smem>>, %arg7: memref<1x1x1xf32, #tpu.memory_space<vmem>>, %arg8: memref<1x128xf32, #tpu.memory_space<vmem>>) attributes {dimension_semantics = [#tpu.dimension_semantics<parallel>, #tpu.dimension_semantics<arbitrary>], iteration_bounds = array<i64: 2, 1>, scalar_prefetch = 0 : i64, scratch_operands = 1 : i64, tpu.core_type = #tpu.core_type<tc>, window_params = [{transform_indices = @transform_0, window_bounds = array<i64: 1, 16, 768>}, {pipeline_mode = #tpu.pipeline_mode<synchronous>, transform_indices = @transform_1, window_bounds = array<i64: 768, 128>}, {pipeline_mode = #tpu.pipeline_mode<synchronous>, transform_indices = @transform_2, window_bounds = array<i64: 1, 128>}, {pipeline_mode = #tpu.pipeline_mode<synchronous>, transform_indices = @transform_3, window_bounds = array<i64: 1, 128>}, {transform_indices = @transform_4, window_bounds = array<i64: 1>}, {transform_indices = @transform_5, window_bounds = array<i64: 1, 1, 1>}]} {
    %c0_i32 = arith.constant 0 : i32
    %0 = arith.cmpi eq, %arg1, %c0_i32 : i32
    %1 = arith.extui %0 : i1 to i32
    %c0_i32_0 = arith.constant 0 : i32
    %2 = arith.cmpi ne, %1, %c0_i32_0 : i32
    scf.if %2 {
      %cst_15 = arith.constant 0.000000e+00 : f32
      %20 = vector.broadcast %cst_15 : f32 to vector<1x128xf32>
      %c0_16 = arith.constant 0 : index
      %c0_17 = arith.constant 0 : index
      %21 = vector.load %arg8[%c0_16, %c0_17] : memref<1x128xf32, #tpu.memory_space<vmem>>, vector<1x128xf32>
      tpu.vector_store %arg8[%c0_16, %c0_17], %20 {strides = array<i32>} : memref<1x128xf32, #tpu.memory_space<vmem>>, vector<1x128xf32>,
    } else {
    }
    %c0 = arith.constant 0 : index
    %c0_1 = arith.constant 0 : index
    %c0_2 = arith.constant 0 : index
    %3 = vector.load %arg2[%c0, %c0_1, %c0_2] : memref<1x16x768xbf16, #tpu.memory_space<vmem>>, vector<1x16x768xbf16>
    %4 = vector.shape_cast %3 : vector<1x16x768xbf16> to vector<16x768xbf16>
    %c0_3 = arith.constant 0 : index
    %c0_4 = arith.constant 0 : index
    %5 = vector.load %arg3[%c0_3, %c0_4] : memref<768x128xbf16, #tpu.memory_space<vmem>>, vector<768x128xbf16>
    %cst = arith.constant dense<0.000000e+00> : vector<16x128xf32>
    %6 = tpu.matmul %4, %5, %cst {dimension_numbers = #tpu.dot_dimension_numbers<[1], [0], [0], [1], [0, 0, 1, 1], [], []>} : vector<16x768xbf16>, vector<768x128xbf16>, vector<16x128xf32> -> vector<16x128xf32>
    %c0_5 = arith.constant 0 : index
    %c0_6 = arith.constant 0 : index
    %7 = vector.load %arg4[%c0_5, %c0_6] : memref<1x128xf32, #tpu.memory_space<vmem>>, vector<1x128xf32>
    %8 = vector.broadcast %7 : vector<1x128xf32> to vector<16x128xf32>
    %9 = arith.addf %6, %8 : vector<16x128xf32>
    %cst_7 = arith.constant 0.000000e+00 : f32
    %10 = vector.broadcast %cst_7 : f32 to vector<16x128xf32>
    %11 = arith.maximumf %9, %10 : vector<16x128xf32>
    %c0_8 = arith.constant 0 : index
    %c0_9 = arith.constant 0 : index
    %12 = vector.load %arg8[%c0_8, %c0_9] : memref<1x128xf32, #tpu.memory_space<vmem>>, vector<1x128xf32>
    %cst_10 = arith.constant dense<0.000000e+00> : vector<128xf32>
    %13 = vector.multi_reduction <add>, %11, %cst_10 [0] : vector<16x128xf32> to vector<128xf32>
    %14 = vector.shape_cast %13 : vector<128xf32> to vector<1x128xf32>
    %15 = arith.addf %12, %14 : vector<1x128xf32>
    %c0_11 = arith.constant 0 : index
    %c0_12 = arith.constant 0 : index
    %16 = vector.load %arg8[%c0_11, %c0_12] : memref<1x128xf32, #tpu.memory_space<vmem>>, vector<1x128xf32>
    tpu.vector_store %arg8[%c0_11, %c0_12], %15 {strides = array<i32>} : memref<1x128xf32, #tpu.memory_space<vmem>>, vector<1x128xf32>,
    %c0_i32_13 = arith.constant 0 : i32
    %17 = arith.cmpi eq, %arg1, %c0_i32_13 : i32
    %18 = arith.extui %17 : i1 to i32
    %c0_i32_14 = arith.constant 0 : i32
    %19 = arith.cmpi ne, %18, %c0_i32_14 : i32
    scf.if %19 {
      %c0_15 = arith.constant 0 : index
      %c0_16 = arith.constant 0 : index
      %20 = vector.load %arg8[%c0_15, %c0_16] : memref<1x128xf32, #tpu.memory_space<vmem>>, vector<1x128xf32>
      %c0_17 = arith.constant 0 : index
      %c0_18 = arith.constant 0 : index
      %21 = vector.load %arg5[%c0_17, %c0_18] : memref<1x128xf32, #tpu.memory_space<vmem>>, vector<1x128xf32>
      %22 = arith.mulf %20, %21 : vector<1x128xf32>
      %23 = vector.shape_cast %22 : vector<1x128xf32> to vector<1x1x128xf32>
      %cst_19 = arith.constant dense<0.000000e+00> : vector<1xf32>
      %24 = vector.multi_reduction <add>, %23, %cst_19 [1, 2] : vector<1x1x128xf32> to vector<1xf32>
      %25 = vector.shape_cast %24 : vector<1xf32> to vector<1x1x1xf32>
      %26 = vector.extract %25[0, 0, 0] : f32 from vector<1x1x1xf32>
      %cst_20 = arith.constant 6.250000e-02 : f32
      %27 = arith.mulf %26, %cst_20 : f32
      %c0_21 = arith.constant 0 : index
      %28 = memref.load %arg6[%c0_21] : memref<1xf32, #tpu.memory_space<smem>>
      %29 = arith.addf %27, %28 : f32
      %30 = vector.broadcast %29 : f32 to vector<1x1x1xf32>
      %c0_22 = arith.constant 0 : index
      %c0_23 = arith.constant 0 : index
      %c0_24 = arith.constant 0 : index
      %31 = vector.load %arg7[%c0_22, %c0_23, %c0_24] : memref<1x1x1xf32, #tpu.memory_space<vmem>>, vector<1x1x1xf32>
      tpu.vector_store %arg7[%c0_22, %c0_23, %c0_24], %30 {strides = array<i32>} : memref<1x1x1xf32, #tpu.memory_space<vmem>>, vector<1x1x1xf32>,
    } else {
    }
    return
  }
  func.func @transform_0(%arg0: i32, %arg1: i32) -> (i32, i32, i32) {
    %c0_i32 = arith.constant 0 : i32
    %c0_i32_0 = arith.constant 0 : i32
    return %arg0, %arg1, %c0_i32 : i32, i32, i32
  }
  func.func @transform_1(%arg0: i32, %arg1: i32) -> (i32, i32) {
    %c0_i32 = arith.constant 0 : i32
    %c0_i32_0 = arith.constant 0 : i32
    %c0_i32_1 = arith.constant 0 : i32
    return %c0_i32, %c0_i32_0 : i32, i32
  }
  func.func @transform_2(%arg0: i32, %arg1: i32) -> (i32, i32) {
    %c0_i32 = arith.constant 0 : i32
    %c0_i32_0 = arith.constant 0 : i32
    %c0_i32_1 = arith.constant 0 : i32
    return %c0_i32, %c0_i32_0 : i32, i32
  }
  func.func @transform_3(%arg0: i32, %arg1: i32) -> (i32, i32) {
    %c0_i32 = arith.constant 0 : i32
    %c0_i32_0 = arith.constant 0 : i32
    %c0_i32_1 = arith.constant 0 : i32
    return %c0_i32, %c0_i32_0 : i32, i32
  }
  func.func @transform_4(%arg0: i32, %arg1: i32) -> i32 {
    %c0_i32 = arith.constant 0 : i32
    %c0_i32_0 = arith.constant 0 : i32
    return %c0_i32 : i32
  }
  func.func @transform_5(%arg0: i32, %arg1: i32) -> (i32, i32, i32) {
    %c0_i32 = arith.constant 0 : i32
    %c0_i32_0 = arith.constant 0 : i32
    %c0_i32_1 = arith.constant 0 : i32
    return %arg0, %c0_i32, %c0_i32_0 : i32, i32, i32
  }
}

</mosaic_0001>

<llo_original>
// kernel: tpu_custom_call.1
$region0: #{tpu_custom_call.1}
  #allocation0 [shape = 'u32[]', space=smem, size = 0x4, offset = 0x4, fixed_abs, tag = 'smem constant byte address 0x4 - core index']
  #allocation1 [shape = 'u32[72,128]{1,0:T(1,128)}', space=vmem, size = 0x9000, scoped, tag = 'internal scratch']
  #allocation2 [shape = 'f32[1,128]{1,0:T(1,128)}', space=vmem, size = 0x200, scoped, tag = 'scratch operand']
  #allocation3 [shape = 'f32[1]{0:T(128)S(6)}', space=smem, size = 0x200, scoped, tag = 'scoped memory for tpu_custom_call.1']
  %s0 = inlined_call_operand.hbm [shape: bf16[2,16,768], index: 0, kind: input, shape index: {}]
  %s1 = inlined_call_operand.hbm [shape: bf16[768,128], index: 1, kind: input, shape index: {}]
  %s2 = inlined_call_operand.vmem [shape: f32[1,128], index: 2, kind: input, shape index: {}]
  %s3 = inlined_call_operand.vmem [shape: f32[1,128], index: 3, kind: input, shape index: {}]
  %s4 = inlined_call_operand.<no memory space> [shape: f32[1], index: 4, kind: input, shape index: {}]
  %s5 = inlined_call_operand.vmem [shape: f32[2,1,1], index: 5, kind: output, shape index: {}]
  %s6 = sld [smem:[#allocation0]]
  $region69: #{tpu_custom_call.1} parent=0
    _
  %s8 = ssub.s32 1, %s6
  %s9 = scalar_select 0, %s8, %s6
  %10 = sst [smem:[#allocation3]] %s4
  $region1: #{tpu_custom_call.1} parent=0
    #allocation4 [shape = 'u8[49152]{0}', space=vmem, size = 0xc000, scoped, tag = 'input window, operand 0']
    #allocation5 [shape = 's32[2]{0}', space=sflag, size = 0x8, scoped, tag = 'scoped memory for tpu_custom_call.1']
    #allocation6 [shape = 'u8[196608]{0}', space=vmem, size = 0x30000, scoped, tag = 'input window, operand 1, single buffered']
    #allocation7 [shape = 's32[1]{0}', space=sflag, size = 0x4, scoped, tag = 'scoped memory for tpu_custom_call.1']
    %11 = vsyncpa [#allocation5], 0
    %s12 = scalar_lea.sflag [#allocation5], 1
    %13 = vsyncpa %s12, 0
    %14 = vsyncpa [#allocation7], 0
    loop: start=0, step=1, limit=4
    $region2: #{tpu_custom_call.1} parent=1 // loop_pre_header
      _
    $region3: #{tpu_custom_call.1} parent=1 // loop_header
      %s16 = sphi 0, %s20
      %p17 = scmp.ge.s32.totalorder %s16, 4
      %s23 = sphi 0, %s35
      %s24 = sphi 0, %s31
      %s25 = sphi 0, %s23
      %s26 = sphi 0, %s24
      %s27 = sphi 0, %s25
      %s28 = sphi 0, %s26
      %s40 = sphi 0, %s42
      %s43 = sphi 0, %s40
      %s44 = sphi 0, %s43
      %s60 = sphi 0, %s44
      %s64 = sphi 0, %s64
      %s66 = sphi 0, %s64
      %s67 = sphi 0, %s66
      %s81 = sphi 0, %s67
      %s85 = sphi 0, %s85
      %s87 = sphi 0, %s85
      %s88 = sphi 0, %s87
      %s102 = sphi 0, %s88
      %s106 = sphi 0, %s106
      %s108 = sphi 0, %s106
      %s109 = sphi 0, %s108
      %s123 = sphi 0, %s109
      %s127 = sphi 0, %s127
      %s129 = sphi 0, %s127
      %s130 = sphi 0, %s129
      %s144 = sphi 0, %s130
      %s150 = sphi 0, %s152
      %s153 = sphi 0, %s150
      %s154 = sphi 0, %s153
      %s170 = sphi 0, %s154
    $region4: #{tpu_custom_call.1} parent=1 // loop_header_branch
      %19 = sbr.rel (%p17) target = $region8
    $region5: #{tpu_custom_call.1} parent=1 // loop_body
      %s21 = ssub.s32 %s16, 1
      %s22 = ssub.s32 %s16, 2
      %s29 = sadd.s32 1, %s24
      %p30 = scmp.ge.s32.totalorder %s29, 1
      %s31 = scalar_select %p30, 0, %s29
      %s32 = sadd.s32 1, %s23
      %s33 = scalar_select %p30, %s32, %s23
      %p34 = scmp.ge.s32.totalorder %s33, 2
      %s35 = scalar_select %p34, 0, %s33
      %s36 = ssub.s32 %s23, %s35
      %s37 = ssub.s32 %s24, %s31
      %s38 = sor.u32 %s36, %s37
      %p39 = scmp.eq.s32.totalorder %s38, 0
      %s41 = sadd.s32 %s40, 1
      %s42 = scalar_select %p39, %s40, %s41
      %p45 = pneg %p39
      %p46 = scmp.eq.s32.totalorder %s16, 1
      %p47 = por %p45, %p46
      %p48 = scmp.ne.s32.totalorder %s40, %s43
      %p49 = scmp.eq.s32.totalorder %s16, 0
      %p50 = por %p48, %p49
      %p51 = scmp.ne.s32.totalorder %s40, %s43
      %p52 = scmp.eq.s32.totalorder %s21, 1
      %p53 = por %p51, %p52
      %p54 = scmp.ne.s32.totalorder %s43, %s44
      %p55 = scmp.eq.s32.totalorder %s21, 0
      %p56 = por %p54, %p55
      %p57 = scmp.ne.s32.totalorder %s43, %s44
      %p58 = scmp.eq.s32.totalorder %s22, 1
      %p59 = por %p57, %p58
      %p61 = scmp.ne.s32.totalorder %s44, %s60
      %p62 = scmp.eq.s32.totalorder %s22, 0
      %p63 = por %p61, %p62
      %s65 = sadd.s32 %s64, 1
      %p68 = scmp.eq.s32.totalorder %s16, 1
      %p69 = scmp.ne.s32.totalorder %s64, %s66
      %p70 = scmp.eq.s32.totalorder %s16, 0
      %p71 = por %p69, %p70
      %p72 = scmp.ne.s32.totalorder %s64, %s66
      %p73 = scmp.eq.s32.totalorder %s21, 1
      %p74 = por %p72, %p73
      %p75 = scmp.ne.s32.totalorder %s66, %s67
      %p76 = scmp.eq.s32.totalorder %s21, 0
      %p77 = por %p75, %p76
      %p78 = scmp.ne.s32.totalorder %s66, %s67
      %p79 = scmp.eq.s32.totalorder %s22, 1
      %p80 = por %p78, %p79
      %p82 = scmp.ne.s32.totalorder %s67, %s81
      %p83 = scmp.eq.s32.totalorder %s22, 0
      %p84 = por %p82, %p83
      %s86 = sadd.s32 %s85, 1
      %p89 = scmp.eq.s32.totalorder %s16, 1
      %p90 = scmp.ne.s32.totalorder %s85, %s87
      %p91 = scmp.eq.s32.totalorder %s16, 0
      %p92 = por %p90, %p91
      %p93 = scmp.ne.s32.totalorder %s85, %s87
      %p94 = scmp.eq.s32.totalorder %s21, 1
      %p95 = por %p93, %p94
      %p96 = scmp.ne.s32.totalorder %s87, %s88
      %p97 = scmp.eq.s32.totalorder %s21, 0
      %p98 = por %p96, %p97
      %p99 = scmp.ne.s32.totalorder %s87, %s88
      %p100 = scmp.eq.s32.totalorder %s22, 1
      %p101 = por %p99, %p100
      %p103 = scmp.ne.s32.totalorder %s88, %s102
      %p104 = scmp.eq.s32.totalorder %s22, 0
      %p105 = por %p103, %p104
      %s107 = sadd.s32 %s106, 1
      %p110 = scmp.eq.s32.totalorder %s16, 1
      %p111 = scmp.ne.s32.totalorder %s106, %s108
      %p112 = scmp.eq.s32.totalorder %s16, 0
      %p113 = por %p111, %p112
      %p114 = scmp.ne.s32.totalorder %s106, %s108
      %p115 = scmp.eq.s32.totalorder %s21, 1
      %p116 = por %p114, %p115
      %p117 = scmp.ne.s32.totalorder %s108, %s109
      %p118 = scmp.eq.s32.totalorder %s21, 0
      %p119 = por %p117, %p118
      %p120 = scmp.ne.s32.totalorder %s108, %s109
      %p121 = scmp.eq.s32.totalorder %s22, 1
      %p122 = por %p120, %p121
      %p124 = scmp.ne.s32.totalorder %s109, %s123
      %p125 = scmp.eq.s32.totalorder %s22, 0
      %p126 = por %p124, %p125
      %s128 = sadd.s32 %s127, 1
      %p131 = scmp.eq.s32.totalorder %s16, 1
      %p132 = scmp.ne.s32.totalorder %s127, %s129
      %p133 = scmp.eq.s32.totalorder %s16, 0
      %p134 = por %p132, %p133
      %p135 = scmp.ne.s32.totalorder %s127, %s129
      %p136 = scmp.eq.s32.totalorder %s21, 1
      %p137 = por %p135, %p136
      %p138 = scmp.ne.s32.totalorder %s129, %s130
      %p139 = scmp.eq.s32.totalorder %s21, 0
      %p140 = por %p138, %p139
      %p141 = scmp.ne.s32.totalorder %s129, %s130
      %p142 = scmp.eq.s32.totalorder %s22, 1
      %p143 = por %p141, %p142
      %p145 = scmp.ne.s32.totalorder %s130, %s144
      %p146 = scmp.eq.s32.totalorder %s22, 0
      %p147 = por %p145, %p146
      %s148 = ssub.s32 %s23, %s35
      %p149 = scmp.eq.s32.totalorder %s148, 0
      %s151 = sadd.s32 %s150, 1
      %s152 = scalar_select %p149, %s150, %s151
      %p155 = pneg %p149
      %p156 = scmp.eq.s32.totalorder %s16, 1
      %p157 = por %p155, %p156
      %p158 = scmp.ne.s32.totalorder %s150, %s153
      %p159 = scmp.eq.s32.totalorder %s16, 0
      %p160 = por %p158, %p159
      %p161 = scmp.ne.s32.totalorder %s150, %s153
      %p162 = scmp.eq.s32.totalorder %s21, 1
      %p163 = por %p161, %p162
      %p164 = scmp.ne.s32.totalorder %s153, %s154
      %p165 = scmp.eq.s32.totalorder %s21, 0
      %p166 = por %p164, %p165
      %p167 = scmp.ne.s32.totalorder %s153, %s154
      %p168 = scmp.eq.s32.totalorder %s22, 1
      %p169 = por %p167, %p168
      %p171 = scmp.ne.s32.totalorder %s154, %s170
      %p172 = scmp.eq.s32.totalorder %s22, 0
      %p173 = por %p171, %p172
      %p174 = scmp.le.s32.totalorder 1, %s16
      %p175 = scmp.lt.s32.totalorder %s16, 3
      %p176 = pnand %p174, %p175
      %p177 = pneg %p176
      // Predicated region
      $region9: #{tpu_custom_call.1} parent=5 // pred_check
        _
      $region10: #{tpu_custom_call.1} parent=5 // pred_check_branch
        %179 = sbr.rel (%p176) target = $region12
      $region11: #{tpu_custom_call.1} parent=5 // pred_region
        %s180 = ssub.s32 %s16, 1
        // Predicated region
        $region13: #{tpu_custom_call.1} parent=11 // pred_check
          %p181 = pneg %p77
        $region14: #{tpu_custom_call.1} parent=11 // pred_check_branch
          %183 = sbr.rel (%p181) target = $region16
        $region15: #{tpu_custom_call.1} parent=11 // pred_region
          %185 = vsyncadd [#allocation7], 0
          %s186 = sshll.u32 %s1, 4
          %s187 = int_to_ptr.hbm [resolvable:$true] %s186
          %s188 = sshll.u32 [#allocation6], 4
          %s189 = int_to_ptr.vmem [resolvable:$true] %s188
          %194 = dma.hbm_to_vmem [thread:$0]  %s187, 6144, %s189, [#allocation7], 64, 64, 4
        $region16: #{tpu_custom_call.1} parent=11 // pred_fallthru
          _
        // Predicated region
        $region17: #{tpu_custom_call.1} parent=11 // pred_check
          %p195 = pneg %p98
        $region18: #{tpu_custom_call.1} parent=11 // pred_check_branch
          %197 = sbr.rel (%p195) target = $region20
        $region19: #{tpu_custom_call.1} parent=11 // pred_region
          _
        $region20: #{tpu_custom_call.1} parent=11 // pred_fallthru
          _
        // Predicated region
        $region21: #{tpu_custom_call.1} parent=11 // pred_check
          %p198 = pneg %p119
        $region22: #{tpu_custom_call.1} parent=11 // pred_check_branch
          %200 = sbr.rel (%p198) target = $region24
        $region23: #{tpu_custom_call.1} parent=11 // pred_region
          _
        $region24: #{tpu_custom_call.1} parent=11 // pred_fallthru
          _
        // Predicated region
        $region25: #{tpu_custom_call.1} parent=11 // pred_check
          %p201 = pneg %p140
        $region26: #{tpu_custom_call.1} parent=11 // pred_check_branch
          %203 = sbr.rel (%p201) target = $region28
        $region27: #{tpu_custom_call.1} parent=11 // pred_region
          _
        $region28: #{tpu_custom_call.1} parent=11 // pred_fallthru
          _
      $region12: #{tpu_custom_call.1} parent=5 // pred_fallthru
        _
      %p204 = scmp.lt.s32.totalorder %s16, 2
      // Predicated region
      $region29: #{tpu_custom_call.1} parent=5 // pred_check
        %p205 = pneg %p204
      $region30: #{tpu_custom_call.1} parent=5 // pred_check_branch
        %207 = sbr.rel (%p205) target = $region32
      $region31: #{tpu_custom_call.1} parent=5 // pred_region
        // Predicated region
        $region33: #{tpu_custom_call.1} parent=31 // pred_check
          %p208 = pneg %p50
        $region34: #{tpu_custom_call.1} parent=31 // pred_check_branch
          %210 = sbr.rel (%p208) target = $region36
        $region35: #{tpu_custom_call.1} parent=31 // pred_region
          %s211 = sand.u32 %s40, 1
          %s212 = scalar_lea.sflag [#allocation5], %s211
          %s213 = sand.u32 %s40, 1
          %s214 = smul.addr %s213, 48
          %s215 = scalar_lea.vmem [#allocation4], %s214
          %s216 = smul.u32 2, %s24
          %218 = vsyncadd %s212, 0
          %s219 = smul.addr %s216, 6
          %s220 = smul.addr %s23, 12
          %s221 = sadd.s32 %s219, %s220
          %s222 = smul.addr %s221, 4
          %s223 = scalar_lea.hbm %s0, %s222
          %s224 = sshll.u32 %s223, 4
          %s225 = int_to_ptr.hbm [resolvable:$true] %s224
          %s226 = sshll.u32 %s215, 4
          %s227 = int_to_ptr.vmem [resolvable:$true] %s226
          %232 = dma.hbm_to_vmem [thread:$0]  %s225, 768, %s227, %s212, 384, 384, 24
        $region36: #{tpu_custom_call.1} parent=31 // pred_fallthru
          _
      $region32: #{tpu_custom_call.1} parent=5 // pred_fallthru
        _
      %p233 = scmp.le.s32.totalorder 1, %s16
      %p234 = scmp.lt.s32.totalorder %s16, 3
      %p235 = pnand %p233, %p234
      %p236 = pneg %p235
      // Predicated region
      $region37: #{tpu_custom_call.1} parent=5 // pred_check
        _
      $region38: #{tpu_custom_call.1} parent=5 // pred_check_branch
        %238 = sbr.rel (%p235) target = $region40
      $region39: #{tpu_custom_call.1} parent=5 // pred_region
        %s239 = ssub.s32 %s16, 1
        %s240 = sand.u32 %s43, 1
        %s241 = scalar_lea.sflag [#allocation5], %s240
        %s242 = sand.u32 %s43, 1
        %s243 = smul.addr %s242, 48
        %s244 = scalar_lea.vmem [#allocation4], %s243
        // Predicated region
        $region41: #{tpu_custom_call.1} parent=39 // pred_check
          %p245 = pneg %p56
        $region42: #{tpu_custom_call.1} parent=39 // pred_check_branch
          %247 = sbr.rel (%p245) target = $region44
        $region43: #{tpu_custom_call.1} parent=39 // pred_region
          %249 = dma.done %s241, 768
        $region44: #{tpu_custom_call.1} parent=39 // pred_fallthru
          _
        // Predicated region
        $region45: #{tpu_custom_call.1} parent=39 // pred_check
          %p250 = pneg %p77
        $region46: #{tpu_custom_call.1} parent=39 // pred_check_branch
          %252 = sbr.rel (%p250) target = $region48
        $region47: #{tpu_custom_call.1} parent=39 // pred_region
          %254 = dma.done [#allocation7], 6144
        $region48: #{tpu_custom_call.1} parent=39 // pred_fallthru
          _
        %s255 = sand.u32 %s43, 1
        %s256 = scalar_lea.sflag [#allocation5], %s255
        %s257 = sand.u32 %s43, 1
        %s258 = smul.addr %s257, 48
        %s259 = scalar_lea.vmem [#allocation4], %s258
        %p260 = pneg %p56
        %p261 = pneg %p53
        %p262 = pneg %p77
        %p263 = pneg %p74
        %p264 = pneg %p98
        %p265 = pneg %p95
        %p266 = pneg %p119
        %p267 = pneg %p116
        %p268 = pneg %p140
        %p269 = pneg %p137
        %p270 = pneg %p166
        %p271 = pneg %p163
        %p272 = scmp.lt.s32.totalorder %s25, 1
        %s273 = scalar_select %p272, %s25, 1
        %s274 = scalar_lea.vmem %s5, %s273
        %s275 = smul.u32 2, %s26
        %p276 = scmp.lt.s32.totalorder %s25, 1
        %s277 = scalar_select %p276, %s25, 1
        %s278 = scalar_lea.vmem %s5, %s277
        %p279 = scmp.eq.s32.totalorder %s26, 0
        // Predicated region
        $region49: #{tpu_custom_call.1} parent=39 // pred_check
          %p280 = pneg %p279
        $region50: #{tpu_custom_call.1} parent=39 // pred_check_branch
          %282 = sbr.rel (%p280) target = $region52
        $region51: #{tpu_custom_call.1} parent=39 // pred_region
          %283 = vst [vmem:[#allocation2] sm:$0x1] 0.0
        $region52: #{tpu_custom_call.1} parent=39 // pred_fallthru
          _
        %v284 = vld [vmem:[%s244] sm:$0xff]
        %v285 = vld [vmem:[%s244 + $0x8] sm:$0xff]
        %v286 = vld [vmem:[%s244 + $0x10] sm:$0xff]
        %v287 = vld [vmem:[%s244 + $0x18] sm:$0xff]
        %v288 = vld [vmem:[%s244 + $0x20] sm:$0xff]
        %v289 = vld [vmem:[%s244 + $0x28] sm:$0xff]
        %v290 = vld [vmem:[#allocation6] sm:$0xf]
        %v291 = vld [vmem:[#allocation6 + $0x4] sm:$0xf]
        %v292 = vld [vmem:[#allocation6 + $0x8] sm:$0xf]
        %v293 = vld [vmem:[#allocation6 + $0xc] sm:$0xf]
        %v294 = vld [vmem:[#allocation6 + $0x10] sm:$0xf]
        %v295 = vld [vmem:[#allocation6 + $0x14] sm:$0xf]
        %v296 = vld [vmem:[#allocation6 + $0x18] sm:$0xf]
        %v297 = vld [vmem:[#allocation6 + $0x1c] sm:$0xf]
        %v298 = vld [vmem:[#allocation6 + $0x20] sm:$0xf]
        %v299 = vld [vmem:[#allocation6 + $0x24] sm:$0xf]
        %v300 = vld [vmem:[#allocation6 + $0x28] sm:$0xf]
        %v301 = vld [vmem:[#allocation6 + $0x2c] sm:$0xf]
        %v302 = vld [vmem:[#allocation6 + $0x30] sm:$0xf]
        %v303 = vld [vmem:[#allocation6 + $0x34] sm:$0xf]
        %v304 = vld [vmem:[#allocation6 + $0x38] sm:$0xf]
        %v305 = vld [vmem:[#allocation6 + $0x3c] sm:$0xf]
        %v306 = vld [vmem:[#allocation6 + $0x40] sm:$0xf]
        %v307 = vld [vmem:[#allocation6 + $0x44] sm:$0xf]
        %v308 = vld [vmem:[#allocation6 + $0x48] sm:$0xf]
        %v309 = vld [vmem:[#allocation6 + $0x4c] sm:$0xf]
        %v310 = vld [vmem:[#allocation6 + $0x50] sm:$0xf]
        %v311 = vld [vmem:[#allocation6 + $0x54] sm:$0xf]
        %v312 = vld [vmem:[#allocation6 + $0x58] sm:$0xf]
        %v313 = vld [vmem:[#allocation6 + $0x5c] sm:$0xf]
        %v314 = vld [vmem:[#allocation6 + $0x60] sm:$0xf]
        %v315 = vld [vmem:[#allocation6 + $0x64] sm:$0xf]
        %v316 = vld [vmem:[#allocation6 + $0x68] sm:$0xf]
        %v317 = vld [vmem:[#allocation6 + $0x6c] sm:$0xf]
        %v318 = vld [vmem:[#allocation6 + $0x70] sm:$0xf]
        %v319 = vld [vmem:[#allocation6 + $0x74] sm:$0xf]
        %v320 = vld [vmem:[#allocation6 + $0x78] sm:$0xf]
        %v321 = vld [vmem:[#allocation6 + $0x7c] sm:$0xf]
        %v322 = vld [vmem:[#allocation6 + $0x80] sm:$0xf]
        %v323 = vld [vmem:[#allocation6 + $0x84] sm:$0xf]
        %v324 = vld [vmem:[#allocation6 + $0x88] sm:$0xf]
        %v325 = vld [vmem:[#allocation6 + $0x8c] sm:$0xf]
        %v326 = vld [vmem:[#allocation6 + $0x90] sm:$0xf]
        %v327 = vld [vmem:[#allocation6 + $0x94] sm:$0xf]
        %v328 = vld [vmem:[#allocation6 + $0x98] sm:$0xf]
        %v329 = vld [vmem:[#allocation6 + $0x9c] sm:$0xf]
        %v330 = vld [vmem:[#allocation6 + $0xa0] sm:$0xf]
        %v331 = vld [vmem:[#allocation6 + $0xa4] sm:$0xf]
        %v332 = vld [vmem:[#allocation6 + $0xa8] sm:$0xf]
        %v333 = vld [vmem:[#allocation6 + $0xac] sm:$0xf]
        %v334 = vld [vmem:[#allocation6 + $0xb0] sm:$0xf]
        %v335 = vld [vmem:[#allocation6 + $0xb4] sm:$0xf]
        %v336 = vld [vmem:[#allocation6 + $0xb8] sm:$0xf]
        %v337 = vld [vmem:[#allocation6 + $0xbc] sm:$0xf]
        %v338 = vld [vmem:[#allocation6 + $0xc0] sm:$0xf]
        %v339 = vld [vmem:[#allocation6 + $0xc4] sm:$0xf]
        %v340 = vld [vmem:[#allocation6 + $0xc8] sm:$0xf]
        %v341 = vld [vmem:[#allocation6 + $0xcc] sm:$0xf]
        %v342 = vld [vmem:[#allocation6 + $0xd0] sm:$0xf]
        %v343 = vld [vmem:[#allocation6 + $0xd4] sm:$0xf]
        %v344 = vld [vmem:[#allocation6 + $0xd8] sm:$0xf]
        %v345 = vld [vmem:[#allocation6 + $0xdc] sm:$0xf]
        %v346 = vld [vmem:[#allocation6 + $0xe0] sm:$0xf]
        %v347 = vld [vmem:[#allocation6 + $0xe4] sm:$0xf]
        %v348 = vld [vmem:[#allocation6 + $0xe8] sm:$0xf]
        %v349 = vld [vmem:[#allocation6 + $0xec] sm:$0xf]
        %v350 = vld [vmem:[#allocation6 + $0xf0] sm:$0xf]
        %v351 = vld [vmem:[#allocation6 + $0xf4] sm:$0xf]
        %v352 = vld [vmem:[#allocation6 + $0xf8] sm:$0xf]
        %v353 = vld [vmem:[#allocation6 + $0xfc] sm:$0xf]
        %v354 = vld [vmem:[#allocation6 + $0x100] sm:$0xf]
        %v355 = vld [vmem:[#allocation6 + $0x104] sm:$0xf]
        %v356 = vld [vmem:[#allocation6 + $0x108] sm:$0xf]
        %v357 = vld [vmem:[#allocation6 + $0x10c] sm:$0xf]
        %v358 = vld [vmem:[#allocation6 + $0x110] sm:$0xf]
        %v359 = vld [vmem:[#allocation6 + $0x114] sm:$0xf]
        %v360 = vld [vmem:[#allocation6 + $0x118] sm:$0xf]
        %v361 = vld [vmem:[#allocation6 + $0x11c] sm:$0xf]
        %v362 = vld [vmem:[#allocation6 + $0x120] sm:$0xf]
        %v363 = vld [vmem:[#allocation6 + $0x124] sm:$0xf]
        %v364 = vld [vmem:[#allocation6 + $0x128] sm:$0xf]
        %v365 = vld [vmem:[#allocation6 + $0x12c] sm:$0xf]
        %v366 = vld [vmem:[#allocation6 + $0x130] sm:$0xf]
        %v367 = vld [vmem:[#allocation6 + $0x134] sm:$0xf]
        %v368 = vld [vmem:[#allocation6 + $0x138] sm:$0xf]
        %v369 = vld [vmem:[#allocation6 + $0x13c] sm:$0xf]
        %v370 = vld [vmem:[#allocation6 + $0x140] sm:$0xf]
        %v371 = vld [vmem:[#allocation6 + $0x144] sm:$0xf]
        %v372 = vld [vmem:[#allocation6 + $0x148] sm:$0xf]
        %v373 = vld [vmem:[#allocation6 + $0x14c] sm:$0xf]
        %v374 = vld [vmem:[#allocation6 + $0x150] sm:$0xf]
        %v375 = vld [vmem:[#allocation6 + $0x154] sm:$0xf]
        %v376 = vld [vmem:[#allocation6 + $0x158] sm:$0xf]
        %v377 = vld [vmem:[#allocation6 + $0x15c] sm:$0xf]
        %v378 = vld [vmem:[#allocation6 + $0x160] sm:$0xf]
        %v379 = vld [vmem:[#allocation6 + $0x164] sm:$0xf]
        %v380 = vld [vmem:[#allocation6 + $0x168] sm:$0xf]
        %v381 = vld [vmem:[#allocation6 + $0x16c] sm:$0xf]
        %v382 = vld [vmem:[#allocation6 + $0x170] sm:$0xf]
        %v383 = vld [vmem:[#allocation6 + $0x174] sm:$0xf]
        %v384 = vld [vmem:[#allocation6 + $0x178] sm:$0xf]
        %v385 = vld [vmem:[#allocation6 + $0x17c] sm:$0xf]
        %v386 = vld [vmem:[%s2] sm:$0x1]
        %v388 = vperm.slane %v386, 0
        %v396 = vunpack.c.l.b16 %v284
        %v397 = vunpack.c.h.b16 %v284
        %v398 = vunpack.c.l.b16 %v285
        %v399 = vunpack.c.h.b16 %v285
        %v400 = vunpack.c.l.b16 %v286
        %v401 = vunpack.c.h.b16 %v286
        %v402 = vunpack.c.l.b16 %v287
        %v403 = vunpack.c.h.b16 %v287
        %v404 = vunpack.c.l.b16 %v288
        %v405 = vunpack.c.h.b16 %v288
        %v406 = vunpack.c.l.b16 %v289
        %v407 = vunpack.c.h.b16 %v289
        %v408 = vpack.c.b16 %v402, %v396
        %v409 = vpack.c.b16 %v403, %v397
        %v410 = vpack.c.b16 %v404, %v398
        %v411 = vpack.c.b16 %v405, %v399
        %v412 = vpack.c.b16 %v406, %v400
        %v413 = vpack.c.b16 %v407, %v401
        %v516 = vunpack.c.l.b16 %v290
        %v517 = vunpack.c.l.b16 %v291
        %v518 = vunpack.c.l.b16 %v292
        %v519 = vunpack.c.l.b16 %v293
        %v520 = vunpack.c.l.b16 %v294
        %v521 = vunpack.c.l.b16 %v295
        %v522 = vunpack.c.l.b16 %v296
        %v523 = vunpack.c.l.b16 %v297
        %v524 = vunpack.c.l.b16 %v298
        %v525 = vunpack.c.l.b16 %v299
        %v526 = vunpack.c.l.b16 %v300
        %v527 = vunpack.c.l.b16 %v301
        %v528 = vunpack.c.l.b16 %v302
        %v529 = vunpack.c.l.b16 %v303
        %v530 = vunpack.c.l.b16 %v304
        %v531 = vunpack.c.l.b16 %v305
        %v532 = vunpack.c.l.b16 %v306
        %v533 = vunpack.c.l.b16 %v307
        %v534 = vunpack.c.l.b16 %v308
        %v535 = vunpack.c.l.b16 %v309
        %v536 = vunpack.c.l.b16 %v310
        %v537 = vunpack.c.l.b16 %v311
        %v538 = vunpack.c.l.b16 %v312
        %v539 = vunpack.c.l.b16 %v313
        %v540 = vunpack.c.l.b16 %v314
        %v541 = vunpack.c.l.b16 %v315
        %v542 = vunpack.c.l.b16 %v316
        %v543 = vunpack.c.l.b16 %v317
        %v544 = vunpack.c.l.b16 %v318
        %v545 = vunpack.c.l.b16 %v319
        %v546 = vunpack.c.l.b16 %v320
        %v547 = vunpack.c.l.b16 %v321
        %v548 = vunpack.c.l.b16 %v322
        %v549 = vunpack.c.l.b16 %v323
        %v550 = vunpack.c.l.b16 %v324
        %v551 = vunpack.c.l.b16 %v325
        %v552 = vunpack.c.l.b16 %v326
        %v553 = vunpack.c.l.b16 %v327
        %v554 = vunpack.c.l.b16 %v328
        %v555 = vunpack.c.l.b16 %v329
        %v556 = vunpack.c.l.b16 %v330
        %v557 = vunpack.c.l.b16 %v331
        %v558 = vunpack.c.l.b16 %v332
        %v559 = vunpack.c.l.b16 %v333
        %v560 = vunpack.c.l.b16 %v334
        %v561 = vunpack.c.l.b16 %v335
        %v562 = vunpack.c.l.b16 %v336
        %v563 = vunpack.c.l.b16 %v337
        %v564 = vunpack.c.l.b16 %v338
        %v565 = vunpack.c.l.b16 %v339
        %v566 = vunpack.c.l.b16 %v340
        %v567 = vunpack.c.l.b16 %v341
        %v568 = vunpack.c.l.b16 %v342
        %v569 = vunpack.c.l.b16 %v343
        %v570 = vunpack.c.l.b16 %v344
        %v571 = vunpack.c.l.b16 %v345
        %v572 = vunpack.c.l.b16 %v346
        %v573 = vunpack.c.l.b16 %v347
        %v574 = vunpack.c.l.b16 %v348
        %v575 = vunpack.c.l.b16 %v349
        %v576 = vunpack.c.l.b16 %v350
        %v577 = vunpack.c.l.b16 %v351
        %v578 = vunpack.c.l.b16 %v352
        %v579 = vunpack.c.l.b16 %v353
        %v580 = vunpack.c.l.b16 %v354
        %v581 = vunpack.c.l.b16 %v355
        %v582 = vunpack.c.l.b16 %v356
        %v583 = vunpack.c.l.b16 %v357
        %v584 = vunpack.c.l.b16 %v358
        %v585 = vunpack.c.l.b16 %v359
        %v586 = vunpack.c.l.b16 %v360
        %v587 = vunpack.c.l.b16 %v361
        %v588 = vunpack.c.l.b16 %v362
        %v589 = vunpack.c.l.b16 %v363
        %v590 = vunpack.c.l.b16 %v364
        %v591 = vunpack.c.l.b16 %v365
        %v592 = vunpack.c.l.b16 %v366
        %v593 = vunpack.c.l.b16 %v367
        %v594 = vunpack.c.l.b16 %v368
        %v595 = vunpack.c.l.b16 %v369
        %v596 = vunpack.c.l.b16 %v370
        %v597 = vunpack.c.l.b16 %v371
        %v598 = vunpack.c.l.b16 %v372
        %v599 = vunpack.c.l.b16 %v373
        %v600 = vunpack.c.l.b16 %v374
        %v601 = vunpack.c.l.b16 %v375
        %v602 = vunpack.c.l.b16 %v376
        %v603 = vunpack.c.l.b16 %v377
        %v604 = vunpack.c.l.b16 %v378
        %v605 = vunpack.c.l.b16 %v379
        %v606 = vunpack.c.l.b16 %v380
        %v607 = vunpack.c.l.b16 %v381
        %v608 = vunpack.c.l.b16 %v382
        %v609 = vunpack.c.l.b16 %v383
        %v610 = vunpack.c.l.b16 %v384
        %v611 = vunpack.c.l.b16 %v385
        %v612 = vpack.c.b16 %v517, %v516
        %v613 = vpack.c.b16 %v519, %v518
        %v614 = vpack.c.b16 %v521, %v520
        %v615 = vpack.c.b16 %v523, %v522
        %v616 = vpack.c.b16 %v525, %v524
        %v617 = vpack.c.b16 %v527, %v526
        %v618 = vpack.c.b16 %v529, %v528
        %v619 = vpack.c.b16 %v531, %v530
        %v620 = vpack.c.b16 %v533, %v532
        %v621 = vpack.c.b16 %v535, %v534
        %v622 = vpack.c.b16 %v537, %v536
        %v623 = vpack.c.b16 %v539, %v538
        %v624 = vpack.c.b16 %v541, %v540
        %v625 = vpack.c.b16 %v543, %v542
        %v626 = vpack.c.b16 %v545, %v544
        %v627 = vpack.c.b16 %v547, %v546
        %v628 = vpack.c.b16 %v549, %v548
        %v629 = vpack.c.b16 %v551, %v550
        %v630 = vpack.c.b16 %v553, %v552
        %v631 = vpack.c.b16 %v555, %v554
        %v632 = vpack.c.b16 %v557, %v556
        %v633 = vpack.c.b16 %v559, %v558
        %v634 = vpack.c.b16 %v561, %v560
        %v635 = vpack.c.b16 %v563, %v562
        %v636 = vpack.c.b16 %v565, %v564
        %v637 = vpack.c.b16 %v567, %v566
        %v638 = vpack.c.b16 %v569, %v568
        %v639 = vpack.c.b16 %v571, %v570
        %v640 = vpack.c.b16 %v573, %v572
        %v641 = vpack.c.b16 %v575, %v574
        %v642 = vpack.c.b16 %v577, %v576
        %v643 = vpack.c.b16 %v579, %v578
        %v644 = vpack.c.b16 %v581, %v580
        %v645 = vpack.c.b16 %v583, %v582
        %v646 = vpack.c.b16 %v585, %v584
        %v647 = vpack.c.b16 %v587, %v586
        %v648 = vpack.c.b16 %v589, %v588
        %v649 = vpack.c.b16 %v591, %v590
        %v650 = vpack.c.b16 %v593, %v592
        %v651 = vpack.c.b16 %v595, %v594
        %v652 = vpack.c.b16 %v597, %v596
        %v653 = vpack.c.b16 %v599, %v598
        %v654 = vpack.c.b16 %v601, %v600
        %v655 = vpack.c.b16 %v603, %v602
        %v656 = vpack.c.b16 %v605, %v604
        %v657 = vpack.c.b16 %v607, %v606
        %v658 = vpack.c.b16 %v609, %v608
        %v659 = vpack.c.b16 %v611, %v610
        %708 = vmatpush.bf16.msra.mxu0 %v619
        %709 = vmatpush.bf16.msra.mxu0 %v618
        %710 = vmatpush.bf16.msra.mxu0 %v617
        %711 = vmatpush.bf16.msra.mxu0 %v616
        %712 = vmatpush.bf16.msra.mxu0 %v615
        %713 = vmatpush.bf16.msra.mxu0 %v614
        %714 = vmatpush.bf16.msra.mxu0 %v613
        %715 = vmatpush.bf16.msra.mxu0 %v612
        %716 = vmatmul.bf16.gmra.mxu0 %v408
        %v717 = vpop.f32.mrf.mxu0
        %v718 = vadd.f32 %v388, %v717
        %v719 = vpop.f32.mrf.mxu0
        %v720 = vadd.f32 %v388, %v719
        %721 = vdwg.mxu0
        %722 = vmatpush.bf16.msra.mxu0 %v627
        %723 = vmatpush.bf16.msra.mxu0 %v626
        %724 = vmatpush.bf16.msra.mxu0 %v625
        %725 = vmatpush.bf16.msra.mxu0 %v624
        %726 = vmatpush.bf16.msra.mxu0 %v623
        %727 = vmatpush.bf16.msra.mxu0 %v622
        %728 = vmatpush.bf16.msra.mxu0 %v621
        %729 = vmatpush.bf16.msra.mxu0 %v620
        %730 = vmatmul.bf16.gmra.mxu0 %v409
        %v731 = vpop.f32.mrf.mxu0
        %v732 = vadd.f32 %v718, %v731
        %v733 = vpop.f32.mrf.mxu0
        %v734 = vadd.f32 %v720, %v733
        %735 = vdwg.mxu0
        %736 = vmatpush.bf16.msra.mxu0 %v635
        %737 = vmatpush.bf16.msra.mxu0 %v634
        %738 = vmatpush.bf16.msra.mxu0 %v633
        %739 = vmatpush.bf16.msra.mxu0 %v632
        %740 = vmatpush.bf16.msra.mxu0 %v631
        %741 = vmatpush.bf16.msra.mxu0 %v630
        %742 = vmatpush.bf16.msra.mxu0 %v629
        %743 = vmatpush.bf16.msra.mxu0 %v628
        %744 = vmatmul.bf16.gmra.mxu0 %v410
        %v745 = vpop.f32.mrf.mxu0
        %v746 = vadd.f32 %v732, %v745
        %v747 = vpop.f32.mrf.mxu0
        %v748 = vadd.f32 %v734, %v747
        %749 = vdwg.mxu0
        %750 = vmatpush.bf16.msra.mxu0 %v643
        %751 = vmatpush.bf16.msra.mxu0 %v642
        %752 = vmatpush.bf16.msra.mxu0 %v641
        %753 = vmatpush.bf16.msra.mxu0 %v640
        %754 = vmatpush.bf16.msra.mxu0 %v639
        %755 = vmatpush.bf16.msra.mxu0 %v638
        %756 = vmatpush.bf16.msra.mxu0 %v637
        %757 = vmatpush.bf16.msra.mxu0 %v636
        %758 = vmatmul.bf16.gmra.mxu0 %v411
        %v759 = vpop.f32.mrf.mxu0
        %v760 = vadd.f32 %v746, %v759
        %v761 = vpop.f32.mrf.mxu0
        %v762 = vadd.f32 %v748, %v761
        %763 = vdwg.mxu0
        %764 = vmatpush.bf16.msra.mxu0 %v651
        %765 = vmatpush.bf16.msra.mxu0 %v650
        %766 = vmatpush.bf16.msra.mxu0 %v649
        %767 = vmatpush.bf16.msra.mxu0 %v648
        %768 = vmatpush.bf16.msra.mxu0 %v647
        %769 = vmatpush.bf16.msra.mxu0 %v646
        %770 = vmatpush.bf16.msra.mxu0 %v645
        %771 = vmatpush.bf16.msra.mxu0 %v644
        %772 = vmatmul.bf16.gmra.mxu0 %v412
        %v773 = vpop.f32.mrf.mxu0
        %v774 = vadd.f32 %v760, %v773
        %v775 = vpop.f32.mrf.mxu0
        %v776 = vadd.f32 %v762, %v775
        %777 = vdwg.mxu0
        %778 = vmatpush.bf16.msra.mxu0 %v659
        %779 = vmatpush.bf16.msra.mxu0 %v658
        %780 = vmatpush.bf16.msra.mxu0 %v657
        %781 = vmatpush.bf16.msra.mxu0 %v656
        %782 = vmatpush.bf16.msra.mxu0 %v655
        %783 = vmatpush.bf16.msra.mxu0 %v654
        %784 = vmatpush.bf16.msra.mxu0 %v653
        %785 = vmatpush.bf16.msra.mxu0 %v652
        %786 = vmatmul.bf16.gmra.mxu0 %v413
        %v787 = vpop.f32.mrf.mxu0
        %v788 = vadd.f32 %v774, %v787
        %v789 = vpop.f32.mrf.mxu0
        %v790 = vadd.f32 %v776, %v789
        %791 = vdwg.mxu0
        %v792 = vmax.f32 %v788, 0.0
        %v793 = vmax.f32 %v790, 0.0
        %v794 = vld [vmem:[#allocation2] sm:$0x1]
        %v795 = vadd.f32 %v792, %v793
        %v796 = vrot.slane %v795, 4
        %v797 = vadd.f32 %v795, %v796
        %v798 = vrot.slane %v797, 2
        %v799 = vadd.f32 %v797, %v798
        %v800 = vrot.slane %v799, 1
        %v801 = vadd.f32 %v799, %v800
        %v802 = vadd.f32 %v794, %v801
        %803 = vst [vmem:[#allocation2] sm:$0x1] %v802
        // Predicated region
        $region53: #{tpu_custom_call.1} parent=39 // pred_check
          %p804 = pneg %p279
        $region54: #{tpu_custom_call.1} parent=39 // pred_check_branch
          %806 = sbr.rel (%p804) target = $region56
        $region55: #{tpu_custom_call.1} parent=39 // pred_region
          %v807 = vld [vmem:[#allocation2] sm:$0x1]
          %v808 = vld [vmem:[%s3] sm:$0x1]
          %v809 = vmul.f32 %v807, %v808
          %vm810 = vcmask 1040384
          %v811 = vsel %vm810, %v809, 0.0
          %812 = vadd.xlane.f32.xlu0 %v811
          %v813 = vpop.xlane.xlu0 %812
          %v814 = vrot.slane %v813, 4
          %v815 = vadd.f32 %v813, %v814
          %v816 = vrot.slane %v815, 2
          %v817 = vadd.f32 %v815, %v816
          %v818 = vrot.slane %v817, 1
          %v819 = vadd.f32 %v817, %v818
          %s820 = vtos %v819
          %s821 = smul.f32 %s820, 0.0625
          %s822 = sld [smem:[#allocation3]]
          %s823 = sadd.f32 %s821, %s822
          %v824 = vstv %s823
          %vm825 = vcmask 0
          %826 = vst.msk [vmem:[%s278] sm:$0x1] %vm825, %v824
        $region56: #{tpu_custom_call.1} parent=39 // pred_fallthru
          _
        %p827 = scmp.lt.s32.totalorder %s25, 1
        %s828 = scalar_select %p827, %s25, 1
        %s829 = scalar_lea.vmem %s5, %s828
        // Predicated region
        $region57: #{tpu_custom_call.1} parent=39 // pred_check
          %p830 = pneg %p163
        $region58: #{tpu_custom_call.1} parent=39 // pred_check_branch
          %832 = sbr.rel (%p830) target = $region60
        $region59: #{tpu_custom_call.1} parent=39 // pred_region
          _
        $region60: #{tpu_custom_call.1} parent=39 // pred_fallthru
          _
      $region40: #{tpu_custom_call.1} parent=5 // pred_fallthru
        _
      %p833 = scmp.le.s32.totalorder 2, %s16
      // Predicated region
      $region61: #{tpu_custom_call.1} parent=5 // pred_check
        %p834 = pneg %p833
      $region62: #{tpu_custom_call.1} parent=5 // pred_check_branch
        %836 = sbr.rel (%p834) target = $region64
      $region63: #{tpu_custom_call.1} parent=5 // pred_region
        %s837 = ssub.s32 %s16, 2
        // Predicated region
        $region65: #{tpu_custom_call.1} parent=63 // pred_check
          %p838 = pneg %p169
        $region66: #{tpu_custom_call.1} parent=63 // pred_check_branch
          %840 = sbr.rel (%p838) target = $region68
        $region67: #{tpu_custom_call.1} parent=63 // pred_region
          %p841 = scmp.lt.s32.totalorder %s27, 1
          %s842 = scalar_select %p841, %s27, 1
          %s843 = scalar_lea.vmem %s5, %s842
        $region68: #{tpu_custom_call.1} parent=63 // pred_fallthru
          _
      $region64: #{tpu_custom_call.1} parent=5 // pred_fallthru
        _
    $region6: #{tpu_custom_call.1} parent=1 // loop_footer
      %s20 = sadd.s32 1, %s16
    $region7: #{tpu_custom_call.1} parent=1 // loop_footer_branch
      %15 = sbr.rel target = $region3
    $region8: #{tpu_custom_call.1} parent=1 // loop_exit
      _
    %844 = vsyncpa [#allocation5], 1
    %s845 = scalar_lea.sflag [#allocation5], 1
    %846 = vsyncpa %s845, 1
    %847 = vsyncpa [#allocation7], 1

</llo_original>
